<compile_context>
chip_gen: v7x
topology: tpu7x:2x2x1
jax: 0.10.0
libtpu: 0.0.40
codegen_flags: <defaults>
</compile_context>

<pallas_src>
import math
from functools import partial

import jax
import jax.numpy as jnp
from jax.experimental import pallas as pl
from jax.experimental.pallas import tpu as pltpu


# ----------------------------------------------------------------------------
# Linear kernel:  y = x @ W^T + b   (bf16 operands on the MXU, f32 accumulate)
# ----------------------------------------------------------------------------
def _linear_kernel(x_ref, wT_ref, b_ref, o_ref):
    acc = jnp.dot(x_ref[...], wT_ref[...], preferred_element_type=jnp.float32)
    o_ref[...] = (acc + b_ref[...]).astype(o_ref.dtype)


def _linear(x2d, wT, b, out_dtype, *, tile_m):
    """x2d: (M, K) bf16, wT: (K, N) bf16, b: (1, N) f32 -> (M, N) out_dtype."""
    # TODO(synk): also tile the K / N dims for very large d_model.
    M, K = x2d.shape
    N = wT.shape[1]
    assert M % tile_m == 0
    return pl.pallas_call(
        _linear_kernel,
        out_shape=jax.ShapeDtypeStruct((M, N), out_dtype),
        grid_spec=pltpu.PrefetchScalarGridSpec(
            num_scalar_prefetch=0,
            grid=(M // tile_m,),
            in_specs=[
                pl.BlockSpec((tile_m, K), lambda i: (i, 0)),
                # Constant index map: the bf16 weight/bias blocks are fetched
                # once and stay resident across the grid.
                pl.BlockSpec((K, N), lambda i: (0, 0)),
                pl.BlockSpec((1, N), lambda i: (0, 0)),
            ],
            out_specs=pl.BlockSpec((tile_m, N), lambda i: (i, 0)),
        ),
        compiler_params=pltpu.CompilerParams(
            dimension_semantics=("parallel",),
            vmem_limit_bytes=32 * 1024 * 1024,
        ),
    )(x2d, wT, b)


# ----------------------------------------------------------------------------
# Flash-attention kernel (one head block per grid step, online softmax)
# ----------------------------------------------------------------------------
def _flash_attn_kernel(q_ref, k_ref, v_ref, o_ref, m_sc, l_sc, acc_sc, *, scale):
    ki = pl.program_id(3)

    @pl.when(ki == 0)
    def _():
        m_sc[...] = jnp.full_like(m_sc, -jnp.inf)
        l_sc[...] = jnp.zeros_like(l_sc)
        acc_sc[...] = jnp.zeros_like(acc_sc)

    q = q_ref[0]                      # (tile_q, d_head)  bf16
    k = k_ref[0]                      # (tile_kv, d_head) bf16
    v = v_ref[0]                      # (tile_kv, d_head) bf16

    # Contract on d_head of both operands -> no explicit K transpose.
    s = jax.lax.dot_general(
        q, k, dimension_numbers=(((1,), (1,)), ((), ())),
        preferred_element_type=jnp.float32) * scale          # (tile_q, tile_kv) f32

    m_prev = m_sc[...]
    m_new = jnp.maximum(m_prev, jnp.max(s, axis=-1, keepdims=True))
    alpha = jnp.exp(m_prev - m_new)                          # f32
    p = jnp.exp(s - m_new)                                   # f32 stats
    l_sc[...] = alpha * l_sc[...] + jnp.sum(p, axis=-1, keepdims=True)
    acc_sc[...] = alpha * acc_sc[...] + jnp.dot(
        p.astype(v.dtype), v, preferred_element_type=jnp.float32)
    m_sc[...] = m_new

    @pl.when(ki == pl.num_programs(3) - 1)
    def _():
        inv_l = pl.reciprocal(l_sc[...], approx=True)        # EUP slot, ~free
        o_ref[0] = (acc_sc[...] * inv_l).astype(o_ref.dtype)


def _flash_attention(q, k, v, *, head_blocks, d_head, tile_q, tile_kv):
    """q/k/v: (Bg, S, head_blocks * d_head) bf16; returns same shape (context)."""
    Bg, S, _ = q.shape
    assert S % tile_q == 0 and S % tile_kv == 0
    scale = 1.0 / math.sqrt(d_head)

    q_spec = pl.BlockSpec((1, tile_q, d_head), lambda b, h, qi, ki: (b, qi, h))
    kv_spec = pl.BlockSpec((1, tile_kv, d_head), lambda b, h, qi, ki: (b, ki, h))
    o_spec = pl.BlockSpec((1, tile_q, d_head), lambda b, h, qi, ki: (b, qi, h))

    return pl.pallas_call(
        partial(_flash_attn_kernel, scale=scale),
        out_shape=jax.ShapeDtypeStruct(q.shape, q.dtype),
        grid_spec=pltpu.PrefetchScalarGridSpec(
            num_scalar_prefetch=0,
            grid=(Bg, head_blocks, S // tile_q, S // tile_kv),
            in_specs=[q_spec, kv_spec, kv_spec],
            out_specs=o_spec,
            scratch_shapes=[
                pltpu.VMEM((tile_q, 1), jnp.float32),       # running max  m
                pltpu.VMEM((tile_q, 1), jnp.float32),       # running sum  l
                pltpu.VMEM((tile_q, d_head), jnp.float32),  # accumulator
            ],
        ),
        compiler_params=pltpu.CompilerParams(
            dimension_semantics=("parallel", "parallel", "parallel", "arbitrary"),
            vmem_limit_bytes=32 * 1024 * 1024,
        ),
    )(q, k, v)


# ----------------------------------------------------------------------------
# Full module forward
# ----------------------------------------------------------------------------
def multihead_attention(q, k, v, params, *, head_count,
                        tile_q=128, tile_kv=128, tile_m=128):
    """q, k, v: (B, S, D) float32.  params: PyTorch-style Linear weights."""
    B, S, D = q.shape
    if D % head_count != 0:
        raise ValueError("head_count must divide d_model")
    d_head = D // head_count

    # bf16 operands for every MXU matmul; biases stay f32 (added post-accum).
    bf16 = jnp.bfloat16
    wqT, wkT, wvT, woT = (params[n].T.astype(bf16) for n in ("wq", "wk", "wv", "wo"))
    bq, bk, bv, bo = (params[n].reshape(1, D).astype(jnp.float32)
                      for n in ("bq", "bk", "bv", "bo"))

    tm = tile_m if (B * S) % tile_m == 0 else B * S
    x2 = lambda a: a.astype(bf16).reshape(B * S, D)
    Q = _linear(x2(q), wqT, bq, bf16, tile_m=tm).reshape(B, S, D)
    K = _linear(x2(k), wkT, bk, bf16, tile_m=tm).reshape(B, S, D)
    V = _linear(x2(v), wvT, bv, bf16, tile_m=tm).reshape(B, S, D)

    tq = tile_q if S % tile_q == 0 else S
    tkv = tile_kv if S % tile_kv == 0 else S

    if d_head % 128 == 0:
        # Lane-aligned heads: carve (tile, d_head) head blocks directly out of
        # the (B, S, D) projections via BlockSpec -- no reshape/transpose/concat
        # anywhere, and the context lands already in "concat" layout.
        ctx = _flash_attention(Q, K, V, head_blocks=head_count, d_head=d_head,
                               tile_q=tq, tile_kv=tkv)
    else:
        # Small heads (< 128 lanes): present head-major slabs so every block's
        # last dim equals the full array dim (layout plumbing in the wrapper
        # only; the kernel itself is unchanged).
        to_hm = lambda a: (a.reshape(B, S, head_count, d_head)
                            .transpose(0, 2, 1, 3)
                            .reshape(B * head_count, S, d_head))
        ctx = _flash_attention(to_hm(Q), to_hm(K), to_hm(V), head_blocks=1,
                               d_head=d_head, tile_q=tq, tile_kv=tkv)
        ctx = (ctx.reshape(B, head_count, S, d_head)
                  .transpose(0, 2, 1, 3).reshape(B, S, D))

    out = _linear(ctx.reshape(B * S, D), woT, bo, q.dtype, tile_m=tm)
    return out.reshape(B, S, D)


# ----------------------------------------------------------------------------
# Pure-JAX reference (f32) reproducing the PyTorch forward (mask=None)
# ----------------------------------------------------------------------------
def _reference_mha(q, k, v, params, *, head_count):
    B, S, D = q.shape
    dh = D // head_count
    lin = lambda x, w, b: x @ w.T + b
    split = lambda x: x.reshape(B, S, head_count, dh).transpose(0, 2, 1, 3)
    Q = split(lin(q, params["wq"], params["bq"]))
    K = split(lin(k, params["wk"], params["bk"]))
    V = split(lin(v, params["wv"], params["bv"]))
    scores = jnp.einsum("bhqd,bhkd->bhqk", Q, K) / math.sqrt(dh)
    p = jax.nn.softmax(scores, axis=-1)
    ctx = jnp.einsum("bhqk,bhkd->bhqd", p, V)
    concat = ctx.transpose(0, 2, 1, 3).reshape(B, S, D)
    return lin(concat, params["wo"], params["bo"])


def init_params(key, d_model):
    """PyTorch-Linear-style init: U(-1/sqrt(d), 1/sqrt(d))."""
    bound = 1.0 / math.sqrt(d_model)
    keys = jax.random.split(key, 8)
    u = lambda kk, shape: jax.random.uniform(
        kk, shape, jnp.float32, minval=-bound, maxval=bound)
    return {
        "wq": u(keys[0], (d_model, d_model)), "bq": u(keys[1], (d_model,)),
        "wk": u(keys[2], (d_model, d_model)), "bk": u(keys[3], (d_model,)),
        "wv": u(keys[4], (d_model, d_model)), "bv": u(keys[5], (d_model,)),
        "wo": u(keys[6], (d_model, d_model)), "bo": u(keys[7], (d_model,)),
    }


if __name__ == "__main__":
    root = jax.random.PRNGKey(0)
    keys = jax.random.split(root, 8)

    # --- main test: lane-aligned heads (d_head = 128), multi-tile flash grid ---
    B, S, D, H = 2, 256, 256, 2
    q = jax.random.normal(keys[0], (B, S, D), jnp.float32)
    k = jax.random.normal(keys[1], (B, S, D), jnp.float32)
    v = jax.random.normal(keys[2], (B, S, D), jnp.float32)
    params = init_params(keys[3], D)

    out = multihead_attention(q, k, v, params, head_count=H)
    out = jax.block_until_ready(out)
    ref = _reference_mha(q, k, v, params, head_count=H)
    assert out.shape == (B, S, D)
    # bf16 matmul operands (f32 accumulation) -> ~1e-3 level error vs f32 ref.
    assert jnp.allclose(out, ref, atol=2e-2, rtol=2e-2), (
        f"mismatch vs reference: max abs err {jnp.max(jnp.abs(out - ref))}")

    # --- secondary test: small heads (d_head = 32) exercise the fallback path ---
    B2, S2, D2, H2 = 1, 128, 64, 2
    q2 = jax.random.normal(keys[4], (B2, S2, D2), jnp.float32)
    k2 = jax.random.normal(keys[5], (B2, S2, D2), jnp.float32)
    v2 = jax.random.normal(keys[6], (B2, S2, D2), jnp.float32)
    params2 = init_params(keys[7], D2)

    out2 = multihead_attention(q2, k2, v2, params2, head_count=H2)
    out2 = jax.block_until_ready(out2)
    ref2 = _reference_mha(q2, k2, v2, params2, head_count=H2)
    assert out2.shape == (B2, S2, D2)
    assert jnp.allclose(out2, ref2, atol=2e-2, rtol=2e-2), (
        f"mismatch vs reference (small-head path): "
        f"max abs err {jnp.max(jnp.abs(out2 - ref2))}")

    print("KERNEL_OK")
</pallas_src>

<mosaic_0001>
module attributes {stable_mosaic.version = 11 : i64} {
  func.func @_linear_kernel(%arg0: i32, %arg1: memref<128x256xbf16, #tpu.memory_space<vmem>>, %arg2: memref<256x256xbf16, #tpu.memory_space<vmem>>, %arg3: memref<1x256xf32, #tpu.memory_space<vmem>>, %arg4: memref<128x256xbf16, #tpu.memory_space<vmem>>) attributes {dimension_semantics = [#tpu.dimension_semantics<parallel>], iteration_bounds = array<i64: 4>, scalar_prefetch = 0 : i64, scratch_operands = 0 : i64, tpu.core_type = #tpu.core_type<tc>, window_params = [{transform_indices = @transform_0, window_bounds = array<i64: 128, 256>}, {pipeline_mode = #tpu.pipeline_mode<synchronous>, transform_indices = @transform_1, window_bounds = array<i64: 256, 256>}, {pipeline_mode = #tpu.pipeline_mode<synchronous>, transform_indices = @transform_2, window_bounds = array<i64: 1, 256>}, {transform_indices = @transform_3, window_bounds = array<i64: 128, 256>}]} {
    %c0 = arith.constant 0 : index
    %c0_0 = arith.constant 0 : index
    %0 = vector.load %arg1[%c0, %c0_0] : memref<128x256xbf16, #tpu.memory_space<vmem>>, vector<128x256xbf16>
    %c0_1 = arith.constant 0 : index
    %c0_2 = arith.constant 0 : index
    %1 = vector.load %arg2[%c0_1, %c0_2] : memref<256x256xbf16, #tpu.memory_space<vmem>>, vector<256x256xbf16>
    %cst = arith.constant dense<0.000000e+00> : vector<128x256xf32>
    %2 = tpu.matmul %0, %1, %cst {dimension_numbers = #tpu.dot_dimension_numbers<[1], [0], [0], [1], [0, 0, 1, 1], [], []>} : vector<128x256xbf16>, vector<256x256xbf16>, vector<128x256xf32> -> vector<128x256xf32>
    %c0_3 = arith.constant 0 : index
    %c0_4 = arith.constant 0 : index
    %3 = vector.load %arg3[%c0_3, %c0_4] : memref<1x256xf32, #tpu.memory_space<vmem>>, vector<1x256xf32>
    %4 = vector.broadcast %3 : vector<1x256xf32> to vector<128x256xf32>
    %5 = arith.addf %2, %4 : vector<128x256xf32>
    %6 = arith.truncf %5 : vector<128x256xf32> to vector<128x256xbf16>
    %c0_5 = arith.constant 0 : index
    %c0_6 = arith.constant 0 : index
    %7 = vector.load %arg4[%c0_5, %c0_6] : memref<128x256xbf16, #tpu.memory_space<vmem>>, vector<128x256xbf16>
    tpu.vector_store %arg4[%c0_5, %c0_6], %6 {strides = array<i32>} : memref<128x256xbf16, #tpu.memory_space<vmem>>, vector<128x256xbf16>,
    return
  }
  func.func @transform_0(%arg0: i32) -> (i32, i32) {
    %c0_i32 = arith.constant 0 : i32
    %c0_i32_0 = arith.constant 0 : i32
    return %arg0, %c0_i32 : i32, i32
  }
  func.func @transform_1(%arg0: i32) -> (i32, i32) {
    %c0_i32 = arith.constant 0 : i32
    %c0_i32_0 = arith.constant 0 : i32
    %c0_i32_1 = arith.constant 0 : i32
    return %c0_i32, %c0_i32_0 : i32, i32
  }
  func.func @transform_2(%arg0: i32) -> (i32, i32) {
    %c0_i32 = arith.constant 0 : i32
    %c0_i32_0 = arith.constant 0 : i32
    %c0_i32_1 = arith.constant 0 : i32
    return %c0_i32, %c0_i32_0 : i32, i32
  }
  func.func @transform_3(%arg0: i32) -> (i32, i32) {
    %c0_i32 = arith.constant 0 : i32
    %c0_i32_0 = arith.constant 0 : i32
    return %arg0, %c0_i32 : i32, i32
  }
}

</mosaic_0001>

<llo_original>
// kernel: tpu_custom_call.1
$region0: #{tpu_custom_call.1}
  #allocation0 [shape = 'u32[]', space=smem, size = 0x4, offset = 0x4, fixed_abs, tag = 'smem constant byte address 0x4 - core index']
  #allocation1 [shape = 'u32[144,128]{1,0:T(1,128)}', space=vmem, size = 0x12000, scoped, tag = 'internal scratch']
  %s0 = inlined_call_operand.hbm [shape: bf16[512,256], index: 0, kind: input, shape index: {}]
  %s1 = inlined_call_operand.hbm [shape: bf16[256,256], index: 1, kind: input, shape index: {}]
  %s2 = inlined_call_operand.vmem [shape: f32[1,256], index: 2, kind: input, shape index: {}]
  %s3 = inlined_call_operand.hbm [shape: bf16[512,256], index: 3, kind: output, shape index: {}]
  %s4 = sld [smem:[#allocation0]]
  $region53: #{tpu_custom_call.1} parent=0
    _
  %s6 = ssub.s32 1, %s4
  %s7 = scalar_select 0, %s6, %s4
  $region1: #{tpu_custom_call.1} parent=0
    #allocation2 [shape = 'u8[131072]{0}', space=vmem, size = 0x20000, scoped, tag = 'input window, operand 0']
    #allocation3 [shape = 's32[2]{0}', space=sflag, size = 0x8, scoped, tag = 'scoped memory for tpu_custom_call.1']
    #allocation4 [shape = 's32[2]{0}', space=sflag, size = 0x8, scoped, tag = 'scoped memory for tpu_custom_call.1']
    #allocation5 [shape = 'u8[131072]{0}', space=vmem, size = 0x20000, scoped, tag = 'input window, operand 1, single buffered']
    #allocation6 [shape = 's32[1]{0}', space=sflag, size = 0x4, scoped, tag = 'scoped memory for tpu_custom_call.1']
    #allocation7 [shape = 'u8[131072]{0}', space=vmem, size = 0x20000, scoped, tag = 'output window, operand 0']
    %8 = vsyncpa [#allocation3], 0
    %s9 = scalar_lea.sflag [#allocation3], 1
    %10 = vsyncpa %s9, 0
    %11 = vsyncpa [#allocation6], 0
    %12 = vsyncpa [#allocation4], 0
    %s13 = scalar_lea.sflag [#allocation4], 1
    %14 = vsyncpa %s13, 0
    loop: start=0, step=1, limit=6
    $region2: #{tpu_custom_call.1} parent=1 // loop_pre_header
      _
    $region3: #{tpu_custom_call.1} parent=1 // loop_header
      %s16 = sphi 0, %s20
      %p17 = scmp.ge.s32.totalorder %s16, 6
      %s26 = sphi 0, %s28
      %s29 = sphi 0, %s26
      %s30 = sphi 0, %s29
      %s46 = sphi 0, %s30
      %s50 = sphi 0, %s50
      %s52 = sphi 0, %s50
      %s53 = sphi 0, %s52
      %s67 = sphi 0, %s53
      %s71 = sphi 0, %s71
      %s73 = sphi 0, %s71
      %s74 = sphi 0, %s73
      %s88 = sphi 0, %s74
      %s94 = sphi 0, %s96
      %s97 = sphi 0, %s94
      %s98 = sphi 0, %s97
      %s114 = sphi 0, %s98
    $region4: #{tpu_custom_call.1} parent=1 // loop_header_branch
      %19 = sbr.rel (%p17) target = $region8
    $region5: #{tpu_custom_call.1} parent=1 // loop_body
      %s21 = ssub.s32 %s16, 1
      %s22 = ssub.s32 %s16, 2
      %s23 = sadd.s32 %s16, 1
      %s24 = ssub.s32 %s16, %s23
      %p25 = scmp.eq.s32.totalorder %s24, 0
      %s27 = sadd.s32 %s26, 1
      %s28 = scalar_select %p25, %s26, %s27
      %p31 = pneg %p25
      %p32 = scmp.eq.s32.totalorder %s16, 3
      %p33 = por %p31, %p32
      %p34 = scmp.ne.s32.totalorder %s26, %s29
      %p35 = scmp.eq.s32.totalorder %s16, 0
      %p36 = por %p34, %p35
      %p37 = scmp.ne.s32.totalorder %s26, %s29
      %p38 = scmp.eq.s32.totalorder %s21, 3
      %p39 = por %p37, %p38
      %p40 = scmp.ne.s32.totalorder %s29, %s30
      %p41 = scmp.eq.s32.totalorder %s21, 0
      %p42 = por %p40, %p41
      %p43 = scmp.ne.s32.totalorder %s29, %s30
      %p44 = scmp.eq.s32.totalorder %s22, 3
      %p45 = por %p43, %p44
      %p47 = scmp.ne.s32.totalorder %s30, %s46
      %p48 = scmp.eq.s32.totalorder %s22, 0
      %p49 = por %p47, %p48
      %s51 = sadd.s32 %s50, 1
      %p54 = scmp.eq.s32.totalorder %s16, 3
      %p55 = scmp.ne.s32.totalorder %s50, %s52
      %p56 = scmp.eq.s32.totalorder %s16, 0
      %p57 = por %p55, %p56
      %p58 = scmp.ne.s32.totalorder %s50, %s52
      %p59 = scmp.eq.s32.totalorder %s21, 3
      %p60 = por %p58, %p59
      %p61 = scmp.ne.s32.totalorder %s52, %s53
      %p62 = scmp.eq.s32.totalorder %s21, 0
      %p63 = por %p61, %p62
      %p64 = scmp.ne.s32.totalorder %s52, %s53
      %p65 = scmp.eq.s32.totalorder %s22, 3
      %p66 = por %p64, %p65
      %p68 = scmp.ne.s32.totalorder %s53, %s67
      %p69 = scmp.eq.s32.totalorder %s22, 0
      %p70 = por %p68, %p69
      %s72 = sadd.s32 %s71, 1
      %p75 = scmp.eq.s32.totalorder %s16, 3
      %p76 = scmp.ne.s32.totalorder %s71, %s73
      %p77 = scmp.eq.s32.totalorder %s16, 0
      %p78 = por %p76, %p77
      %p79 = scmp.ne.s32.totalorder %s71, %s73
      %p80 = scmp.eq.s32.totalorder %s21, 3
      %p81 = por %p79, %p80
      %p82 = scmp.ne.s32.totalorder %s73, %s74
      %p83 = scmp.eq.s32.totalorder %s21, 0
      %p84 = por %p82, %p83
      %p85 = scmp.ne.s32.totalorder %s73, %s74
      %p86 = scmp.eq.s32.totalorder %s22, 3
      %p87 = por %p85, %p86
      %p89 = scmp.ne.s32.totalorder %s74, %s88
      %p90 = scmp.eq.s32.totalorder %s22, 0
      %p91 = por %p89, %p90
      %s92 = ssub.s32 %s16, %s23
      %p93 = scmp.eq.s32.totalorder %s92, 0
      %s95 = sadd.s32 %s94, 1
      %s96 = scalar_select %p93, %s94, %s95
      %p99 = pneg %p93
      %p100 = scmp.eq.s32.totalorder %s16, 3
      %p101 = por %p99, %p100
      %p102 = scmp.ne.s32.totalorder %s94, %s97
      %p103 = scmp.eq.s32.totalorder %s16, 0
      %p104 = por %p102, %p103
      %p105 = scmp.ne.s32.totalorder %s94, %s97
      %p106 = scmp.eq.s32.totalorder %s21, 3
      %p107 = por %p105, %p106
      %p108 = scmp.ne.s32.totalorder %s97, %s98
      %p109 = scmp.eq.s32.totalorder %s21, 0
      %p110 = por %p108, %p109
      %p111 = scmp.ne.s32.totalorder %s97, %s98
      %p112 = scmp.eq.s32.totalorder %s22, 3
      %p113 = por %p111, %p112
      %p115 = scmp.ne.s32.totalorder %s98, %s114
      %p116 = scmp.eq.s32.totalorder %s22, 0
      %p117 = por %p115, %p116
      %p118 = scmp.le.s32.totalorder 1, %s16
      %p119 = scmp.lt.s32.totalorder %s16, 5
      %p120 = pnand %p118, %p119
      %p121 = pneg %p120
      // Predicated region
      $region9: #{tpu_custom_call.1} parent=5 // pred_check
        _
      $region10: #{tpu_custom_call.1} parent=5 // pred_check_branch
        %123 = sbr.rel (%p120) target = $region12
      $region11: #{tpu_custom_call.1} parent=5 // pred_region
        %s124 = ssub.s32 %s16, 1
        // Predicated region
        $region13: #{tpu_custom_call.1} parent=11 // pred_check
          %p125 = pneg %p63
        $region14: #{tpu_custom_call.1} parent=11 // pred_check_branch
          %127 = sbr.rel (%p125) target = $region16
        $region15: #{tpu_custom_call.1} parent=11 // pred_region
          %s129 = ssub.s32 4096, 4096
          %130 = vsyncadd [#allocation6], %s129
          %s131 = sshll.u32 [#allocation5], 4
          %s132 = int_to_ptr.vmem [resolvable:$true] %s131
          %137 = dma.hbm_to_vmem [thread:$0]  %s1, 4096, %s132, [#allocation6], 128, 128, 8
        $region16: #{tpu_custom_call.1} parent=11 // pred_fallthru
          _
        // Predicated region
        $region17: #{tpu_custom_call.1} parent=11 // pred_check
          %p138 = pneg %p84
        $region18: #{tpu_custom_call.1} parent=11 // pred_check_branch
          %140 = sbr.rel (%p138) target = $region20
        $region19: #{tpu_custom_call.1} parent=11 // pred_region
          _
        $region20: #{tpu_custom_call.1} parent=11 // pred_fallthru
          _
      $region12: #{tpu_custom_call.1} parent=5 // pred_fallthru
        _
      %p141 = scmp.lt.s32.totalorder %s16, 4
      // Predicated region
      $region21: #{tpu_custom_call.1} parent=5 // pred_check
        %p142 = pneg %p141
      $region22: #{tpu_custom_call.1} parent=5 // pred_check_branch
        %144 = sbr.rel (%p142) target = $region24
      $region23: #{tpu_custom_call.1} parent=5 // pred_region
        // Predicated region
        $region25: #{tpu_custom_call.1} parent=23 // pred_check
          %p145 = pneg %p36
        $region26: #{tpu_custom_call.1} parent=23 // pred_check_branch
          %147 = sbr.rel (%p145) target = $region28
        $region27: #{tpu_custom_call.1} parent=23 // pred_region
          %s148 = sand.u32 %s26, 1
          %s149 = scalar_lea.sflag [#allocation3], %s148
          %s150 = sand.u32 %s26, 1
          %s151 = smul.addr %s150, 128
          %s152 = scalar_lea.vmem [#allocation2], %s151
          %s153 = smul.u32 16, %s16
          %s155 = ssub.s32 2048, 2048
          %156 = vsyncadd %s149, %s155
          %s157 = smul.addr %s153, 2
          %s158 = smul.addr %s157, 64
          %s159 = scalar_lea.hbm %s0, %s158
          %s160 = sshll.u32 %s152, 4
          %s161 = int_to_ptr.vmem [resolvable:$true] %s160
          %166 = dma.hbm_to_vmem [thread:$0]  %s159, 2048, %s161, %s149, 128, 128, 8
        $region28: #{tpu_custom_call.1} parent=23 // pred_fallthru
          _
      $region24: #{tpu_custom_call.1} parent=5 // pred_fallthru
        _
      %p167 = scmp.le.s32.totalorder 1, %s16
      %p168 = scmp.lt.s32.totalorder %s16, 5
      %p169 = pnand %p167, %p168
      %p170 = pneg %p169
      // Predicated region
      $region29: #{tpu_custom_call.1} parent=5 // pred_check
        _
      $region30: #{tpu_custom_call.1} parent=5 // pred_check_branch
        %172 = sbr.rel (%p169) target = $region32
      $region31: #{tpu_custom_call.1} parent=5 // pred_region
        %s173 = ssub.s32 %s16, 1
        %s174 = sand.u32 %s29, 1
        %s175 = scalar_lea.sflag [#allocation3], %s174
        %s176 = sand.u32 %s29, 1
        %s177 = smul.addr %s176, 128
        %s178 = scalar_lea.vmem [#allocation2], %s177
        // Predicated region
        $region33: #{tpu_custom_call.1} parent=31 // pred_check
          %p179 = pneg %p42
        $region34: #{tpu_custom_call.1} parent=31 // pred_check_branch
          %181 = sbr.rel (%p179) target = $region36
        $region35: #{tpu_custom_call.1} parent=31 // pred_region
          %182 = dma.done %s175, 2048
        $region36: #{tpu_custom_call.1} parent=31 // pred_fallthru
          _
        // Predicated region
        $region37: #{tpu_custom_call.1} parent=31 // pred_check
          %p183 = pneg %p63
        $region38: #{tpu_custom_call.1} parent=31 // pred_check_branch
          %185 = sbr.rel (%p183) target = $region40
        $region39: #{tpu_custom_call.1} parent=31 // pred_region
          %186 = dma.done [#allocation6], 4096
        $region40: #{tpu_custom_call.1} parent=31 // pred_fallthru
          _
        %s187 = sand.u32 %s29, 1
        %s188 = scalar_lea.sflag [#allocation3], %s187
        %s189 = sand.u32 %s29, 1
        %s190 = smul.addr %s189, 128
        %s191 = scalar_lea.vmem [#allocation2], %s190
        %p192 = pneg %p42
        %p193 = pneg %p39
        %p194 = pneg %p63
        %p195 = pneg %p60
        %p196 = pneg %p84
        %p197 = pneg %p81
        %p198 = pneg %p110
        %p199 = pneg %p107
        %s200 = sand.u32 %s97, 1
        %s201 = scalar_lea.sflag [#allocation4], %s200
        %s202 = sand.u32 %s97, 1
        %s203 = smul.addr %s202, 128
        %s204 = scalar_lea.vmem [#allocation7], %s203
        %s205 = smul.u32 16, %s21
        %s206 = smul.u32 16, %s21
        %v207 = vld [vmem:[%s178] sm:$0xff]
        %v208 = vld [vmem:[%s178 + $0x8] sm:$0xff]
        %v209 = vld [vmem:[%s178 + $0x10] sm:$0xff]
        %v210 = vld [vmem:[%s178 + $0x18] sm:$0xff]
        %v211 = vld [vmem:[%s178 + $0x20] sm:$0xff]
        %v212 = vld [vmem:[%s178 + $0x28] sm:$0xff]
        %v213 = vld [vmem:[%s178 + $0x30] sm:$0xff]
        %v214 = vld [vmem:[%s178 + $0x38] sm:$0xff]
        %v215 = vld [vmem:[%s178 + $0x40] sm:$0xff]
        %v216 = vld [vmem:[%s178 + $0x48] sm:$0xff]
        %v217 = vld [vmem:[%s178 + $0x50] sm:$0xff]
        %v218 = vld [vmem:[%s178 + $0x58] sm:$0xff]
        %v219 = vld [vmem:[%s178 + $0x60] sm:$0xff]
        %v220 = vld [vmem:[%s178 + $0x68] sm:$0xff]
        %v221 = vld [vmem:[%s178 + $0x70] sm:$0xff]
        %v222 = vld [vmem:[%s178 + $0x78] sm:$0xff]
        %v223 = vld [vmem:[#allocation5] sm:$0xff]
        %v224 = vld [vmem:[#allocation5 + $0x8] sm:$0xff]
        %v225 = vld [vmem:[#allocation5 + $0x10] sm:$0xff]
        %v226 = vld [vmem:[#allocation5 + $0x18] sm:$0xff]
        %v227 = vld [vmem:[#allocation5 + $0x20] sm:$0xff]
        %v228 = vld [vmem:[#allocation5 + $0x28] sm:$0xff]
        %v229 = vld [vmem:[#allocation5 + $0x30] sm:$0xff]
        %v230 = vld [vmem:[#allocation5 + $0x38] sm:$0xff]
        %v231 = vld [vmem:[#allocation5 + $0x40] sm:$0xff]
        %v232 = vld [vmem:[#allocation5 + $0x48] sm:$0xff]
        %v233 = vld [vmem:[#allocation5 + $0x50] sm:$0xff]
        %v234 = vld [vmem:[#allocation5 + $0x58] sm:$0xff]
        %v235 = vld [vmem:[#allocation5 + $0x60] sm:$0xff]
        %v236 = vld [vmem:[#allocation5 + $0x68] sm:$0xff]
        %v237 = vld [vmem:[#allocation5 + $0x70] sm:$0xff]
        %v238 = vld [vmem:[#allocation5 + $0x78] sm:$0xff]
        %v239 = vld [vmem:[#allocation5 + $0x80] sm:$0xff]
        %v240 = vld [vmem:[#allocation5 + $0x88] sm:$0xff]
        %v241 = vld [vmem:[#allocation5 + $0x90] sm:$0xff]
        %v242 = vld [vmem:[#allocation5 + $0x98] sm:$0xff]
        %v243 = vld [vmem:[#allocation5 + $0xa0] sm:$0xff]
        %v244 = vld [vmem:[#allocation5 + $0xa8] sm:$0xff]
        %v245 = vld [vmem:[#allocation5 + $0xb0] sm:$0xff]
        %v246 = vld [vmem:[#allocation5 + $0xb8] sm:$0xff]
        %v247 = vld [vmem:[#allocation5 + $0xc0] sm:$0xff]
        %v248 = vld [vmem:[#allocation5 + $0xc8] sm:$0xff]
        %v249 = vld [vmem:[#allocation5 + $0xd0] sm:$0xff]
        %v250 = vld [vmem:[#allocation5 + $0xd8] sm:$0xff]
        %v251 = vld [vmem:[#allocation5 + $0xe0] sm:$0xff]
        %v252 = vld [vmem:[#allocation5 + $0xe8] sm:$0xff]
        %v253 = vld [vmem:[#allocation5 + $0xf0] sm:$0xff]
        %v254 = vld [vmem:[#allocation5 + $0xf8] sm:$0xff]
        %v255 = vld [vmem:[%s2] sm:$0x3]
        %v257 = vlaneseq
        %v258 = vshrl.u32 %v257, 7
        %v259 = vsub.s32 0, %v258
        %v260 = vrot.slane %v255, %v259
        %v261 = vlaneseq
        %v262 = vshrl.u32 %v261, 7
        %v263 = vsub.s32 1, %v262
        %v264 = vrot.slane %v255, %v263
        %v283 = vunpack.c.l.b16 %v207
        %v284 = vunpack.c.h.b16 %v207
        %v285 = vunpack.c.l.b16 %v208
        %v286 = vunpack.c.h.b16 %v208
        %v287 = vunpack.c.l.b16 %v209
        %v288 = vunpack.c.h.b16 %v209
        %v289 = vunpack.c.l.b16 %v210
        %v290 = vunpack.c.h.b16 %v210
        %v291 = vunpack.c.l.b16 %v211
        %v292 = vunpack.c.h.b16 %v211
        %v293 = vunpack.c.l.b16 %v212
        %v294 = vunpack.c.h.b16 %v212
        %v295 = vunpack.c.l.b16 %v213
        %v296 = vunpack.c.h.b16 %v213
        %v297 = vunpack.c.l.b16 %v214
        %v298 = vunpack.c.h.b16 %v214
        %v299 = vunpack.c.l.b16 %v215
        %v300 = vunpack.c.h.b16 %v215
        %v301 = vunpack.c.l.b16 %v216
        %v302 = vunpack.c.h.b16 %v216
        %v303 = vunpack.c.l.b16 %v217
        %v304 = vunpack.c.h.b16 %v217
        %v305 = vunpack.c.l.b16 %v218
        %v306 = vunpack.c.h.b16 %v218
        %v307 = vunpack.c.l.b16 %v219
        %v308 = vunpack.c.h.b16 %v219
        %v309 = vunpack.c.l.b16 %v220
        %v310 = vunpack.c.h.b16 %v220
        %v311 = vunpack.c.l.b16 %v221
        %v312 = vunpack.c.h.b16 %v221
        %v313 = vunpack.c.l.b16 %v222
        %v314 = vunpack.c.h.b16 %v222
        %v315 = vpack.c.b16 %v285, %v283
        %v316 = vpack.c.b16 %v286, %v284
        %v317 = vpack.c.b16 %v289, %v287
        %v318 = vpack.c.b16 %v290, %v288
        %v319 = vpack.c.b16 %v293, %v291
        %v320 = vpack.c.b16 %v294, %v292
        %v321 = vpack.c.b16 %v297, %v295
        %v322 = vpack.c.b16 %v298, %v296
        %v323 = vpack.c.b16 %v301, %v299
        %v324 = vpack.c.b16 %v302, %v300
        %v325 = vpack.c.b16 %v305, %v303
        %v326 = vpack.c.b16 %v306, %v304
        %v327 = vpack.c.b16 %v309, %v307
        %v328 = vpack.c.b16 %v310, %v308
        %v329 = vpack.c.b16 %v313, %v311
        %v330 = vpack.c.b16 %v314, %v312
        %v379 = vunpack.c.l.b16 %v223
        %v380 = vunpack.c.h.b16 %v223
        %v381 = vunpack.c.l.b16 %v224
        %v382 = vunpack.c.h.b16 %v224
        %v383 = vunpack.c.l.b16 %v225
        %v384 = vunpack.c.h.b16 %v225
        %v385 = vunpack.c.l.b16 %v226
        %v386 = vunpack.c.h.b16 %v226
        %v387 = vunpack.c.l.b16 %v227
        %v388 = vunpack.c.h.b16 %v227
        %v389 = vunpack.c.l.b16 %v228
        %v390 = vunpack.c.h.b16 %v228
        %v391 = vunpack.c.l.b16 %v229
        %v392 = vunpack.c.h.b16 %v229
        %v393 = vunpack.c.l.b16 %v230
        %v394 = vunpack.c.h.b16 %v230
        %v395 = vunpack.c.l.b16 %v231
        %v396 = vunpack.c.h.b16 %v231
        %v397 = vunpack.c.l.b16 %v232
        %v398 = vunpack.c.h.b16 %v232
        %v399 = vunpack.c.l.b16 %v233
        %v400 = vunpack.c.h.b16 %v233
        %v401 = vunpack.c.l.b16 %v234
        %v402 = vunpack.c.h.b16 %v234
        %v403 = vunpack.c.l.b16 %v235
        %v404 = vunpack.c.h.b16 %v235
        %v405 = vunpack.c.l.b16 %v236
        %v406 = vunpack.c.h.b16 %v236
        %v407 = vunpack.c.l.b16 %v237
        %v408 = vunpack.c.h.b16 %v237
        %v409 = vunpack.c.l.b16 %v238
        %v410 = vunpack.c.h.b16 %v238
        %v411 = vunpack.c.l.b16 %v239
        %v412 = vunpack.c.h.b16 %v239
        %v413 = vunpack.c.l.b16 %v240
        %v414 = vunpack.c.h.b16 %v240
        %v415 = vunpack.c.l.b16 %v241
        %v416 = vunpack.c.h.b16 %v241
        %v417 = vunpack.c.l.b16 %v242
        %v418 = vunpack.c.h.b16 %v242
        %v419 = vunpack.c.l.b16 %v243
        %v420 = vunpack.c.h.b16 %v243
        %v421 = vunpack.c.l.b16 %v244
        %v422 = vunpack.c.h.b16 %v244
        %v423 = vunpack.c.l.b16 %v245
        %v424 = vunpack.c.h.b16 %v245
        %v425 = vunpack.c.l.b16 %v246
        %v426 = vunpack.c.h.b16 %v246
        %v427 = vunpack.c.l.b16 %v247
        %v428 = vunpack.c.h.b16 %v247
        %v429 = vunpack.c.l.b16 %v248
        %v430 = vunpack.c.h.b16 %v248
        %v431 = vunpack.c.l.b16 %v249
        %v432 = vunpack.c.h.b16 %v249
        %v433 = vunpack.c.l.b16 %v250
        %v434 = vunpack.c.h.b16 %v250
        %v435 = vunpack.c.l.b16 %v251
        %v436 = vunpack.c.h.b16 %v251
        %v437 = vunpack.c.l.b16 %v252
        %v438 = vunpack.c.h.b16 %v252
        %v439 = vunpack.c.l.b16 %v253
        %v440 = vunpack.c.h.b16 %v253
        %v441 = vunpack.c.l.b16 %v254
        %v442 = vunpack.c.h.b16 %v254
        %v443 = vpack.c.b16 %v381, %v379
        %v444 = vpack.c.b16 %v382, %v380
        %v445 = vpack.c.b16 %v385, %v383
        %v446 = vpack.c.b16 %v386, %v384
        %v447 = vpack.c.b16 %v389, %v387
        %v448 = vpack.c.b16 %v390, %v388
        %v449 = vpack.c.b16 %v393, %v391
        %v450 = vpack.c.b16 %v394, %v392
        %v451 = vpack.c.b16 %v397, %v395
        %v452 = vpack.c.b16 %v398, %v396
        %v453 = vpack.c.b16 %v401, %v399
        %v454 = vpack.c.b16 %v402, %v400
        %v455 = vpack.c.b16 %v405, %v403
        %v456 = vpack.c.b16 %v406, %v404
        %v457 = vpack.c.b16 %v409, %v407
        %v458 = vpack.c.b16 %v410, %v408
        %v459 = vpack.c.b16 %v413, %v411
        %v460 = vpack.c.b16 %v414, %v412
        %v461 = vpack.c.b16 %v417, %v415
        %v462 = vpack.c.b16 %v418, %v416
        %v463 = vpack.c.b16 %v421, %v419
        %v464 = vpack.c.b16 %v422, %v420
        %v465 = vpack.c.b16 %v425, %v423
        %v466 = vpack.c.b16 %v426, %v424
        %v467 = vpack.c.b16 %v429, %v427
        %v468 = vpack.c.b16 %v430, %v428
        %v469 = vpack.c.b16 %v433, %v431
        %v470 = vpack.c.b16 %v434, %v432
        %v471 = vpack.c.b16 %v437, %v435
        %v472 = vpack.c.b16 %v438, %v436
        %v473 = vpack.c.b16 %v441, %v439
        %v474 = vpack.c.b16 %v442, %v440
        %507 = vmatprep.subr.bf16.mxu0 %v444
        %508 = vmatpush1.bf16.msra.mxu0 %v443
        %509 = vmatprep.subr.bf16.mxu0 %v446
        %510 = vmatpush1.bf16.msra.mxu0 %v445
        %511 = vmatprep.subr.bf16.mxu0 %v448
        %512 = vmatpush1.bf16.msra.mxu0 %v447
        %513 = vmatprep.subr.bf16.mxu0 %v450
        %514 = vmatpush1.bf16.msra.mxu0 %v449
        %515 = vmatprep.subr.bf16.mxu0 %v452
        %516 = vmatpush1.bf16.msra.mxu0 %v451
        %517 = vmatprep.subr.bf16.mxu0 %v454
        %518 = vmatpush1.bf16.msra.mxu0 %v453
        %519 = vmatprep.subr.bf16.mxu0 %v456
        %520 = vmatpush1.bf16.msra.mxu0 %v455
        %521 = vmatprep.subr.bf16.mxu0 %v458
        %522 = vmatpush1.bf16.msra.mxu0 %v457
        %523 = vmatprep.subr.bf16.mxu0 %v460
        %524 = vmatpush1.bf16.msra.mxu0 %v459
        %525 = vmatprep.subr.bf16.mxu0 %v462
        %526 = vmatpush1.bf16.msra.mxu0 %v461
        %527 = vmatprep.subr.bf16.mxu0 %v464
        %528 = vmatpush1.bf16.msra.mxu0 %v463
        %529 = vmatprep.subr.bf16.mxu0 %v466
        %530 = vmatpush1.bf16.msra.mxu0 %v465
        %531 = vmatprep.subr.bf16.mxu0 %v468
        %532 = vmatpush1.bf16.msra.mxu0 %v467
        %533 = vmatprep.subr.bf16.mxu0 %v470
        %534 = vmatpush1.bf16.msra.mxu0 %v469
        %535 = vmatprep.subr.bf16.mxu0 %v472
        %536 = vmatpush1.bf16.msra.mxu0 %v471
        %537 = vmatprep.subr.bf16.mxu0 %v474
        %538 = vmatpush1.bf16.msra.mxu0 %v473
        %539 = vmatprep.mubr.bf16.mxu0 %v316
        %540 = vmatmul.mubr.bf16.gmra.mrb[0].mxu0 %v315
        %v541 = vpop.f32.mrb[0].mxu0
        %v542 = vadd.f32 %v260, %v541
        %v543 = vpop.f32.mrb[0].mxu0
        %v544 = vadd.f32 %v264, %v543
        %v545 = vpop.f32.mrb[0].mxu0
        %v546 = vadd.f32 %v260, %v545
        %v547 = vpop.f32.mrb[0].mxu0
        %v548 = vadd.f32 %v264, %v547
        %549 = vmatprep.mubr.bf16.mxu0 %v318
        %550 = vmatmul.mubr.bf16.gmra.mrb[0].mxu0 %v317
        %v551 = vpop.f32.mrb[0].mxu0
        %v552 = vadd.f32 %v260, %v551
        %v553 = vpop.f32.mrb[0].mxu0
        %v554 = vadd.f32 %v264, %v553
        %v555 = vpop.f32.mrb[0].mxu0
        %v556 = vadd.f32 %v260, %v555
        %v557 = vpop.f32.mrb[0].mxu0
        %v558 = vadd.f32 %v264, %v557
        %559 = vmatprep.mubr.bf16.mxu0 %v320
        %560 = vmatmul.mubr.bf16.gmra.mrb[0].mxu0 %v319
        %v561 = vpop.f32.mrb[0].mxu0
        %v562 = vadd.f32 %v260, %v561
        %v563 = vpop.f32.mrb[0].mxu0
        %v564 = vadd.f32 %v264, %v563
        %v565 = vpop.f32.mrb[0].mxu0
        %v566 = vadd.f32 %v260, %v565
        %v567 = vpop.f32.mrb[0].mxu0
        %v568 = vadd.f32 %v264, %v567
        %569 = vmatprep.mubr.bf16.mxu0 %v322
        %570 = vmatmul.mubr.bf16.gmra.mrb[0].mxu0 %v321
        %v571 = vpop.f32.mrb[0].mxu0
        %v572 = vadd.f32 %v260, %v571
        %v573 = vpop.f32.mrb[0].mxu0
        %v574 = vadd.f32 %v264, %v573
        %v575 = vpop.f32.mrb[0].mxu0
        %v576 = vadd.f32 %v260, %v575
        %v577 = vpop.f32.mrb[0].mxu0
        %v578 = vadd.f32 %v264, %v577
        %579 = vmatprep.mubr.bf16.mxu0 %v324
        %580 = vmatmul.mubr.bf16.gmra.mrb[0].mxu0 %v323
        %v581 = vpop.f32.mrb[0].mxu0
        %v582 = vadd.f32 %v260, %v581
        %v583 = vpop.f32.mrb[0].mxu0
        %v584 = vadd.f32 %v264, %v583
        %v585 = vpop.f32.mrb[0].mxu0
        %v586 = vadd.f32 %v260, %v585
        %v587 = vpop.f32.mrb[0].mxu0
        %v588 = vadd.f32 %v264, %v587
        %589 = vmatprep.mubr.bf16.mxu0 %v326
        %590 = vmatmul.mubr.bf16.gmra.mrb[0].mxu0 %v325
        %v591 = vpop.f32.mrb[0].mxu0
        %v592 = vadd.f32 %v260, %v591
        %v593 = vpop.f32.mrb[0].mxu0
        %v594 = vadd.f32 %v264, %v593
        %v595 = vpop.f32.mrb[0].mxu0
        %v596 = vadd.f32 %v260, %v595
        %v597 = vpop.f32.mrb[0].mxu0
        %v598 = vadd.f32 %v264, %v597
        %599 = vmatprep.mubr.bf16.mxu0 %v328
        %600 = vmatmul.mubr.bf16.gmra.mrb[0].mxu0 %v327
        %v601 = vpop.f32.mrb[0].mxu0
        %v602 = vadd.f32 %v260, %v601
        %v603 = vpop.f32.mrb[0].mxu0
        %v604 = vadd.f32 %v264, %v603
        %v605 = vpop.f32.mrb[0].mxu0
        %v606 = vadd.f32 %v260, %v605
        %v607 = vpop.f32.mrb[0].mxu0
        %v608 = vadd.f32 %v264, %v607
        %609 = vmatprep.mubr.bf16.mxu0 %v330
        %610 = vmatmul.mubr.bf16.gmra.mrb[0].mxu0 %v329
        %v611 = vpop.f32.mrb[0].mxu0
        %v612 = vadd.f32 %v260, %v611
        %v613 = vpop.f32.mrb[0].mxu0
        %v614 = vadd.f32 %v264, %v613
        %v615 = vpop.f32.mrb[0].mxu0
        %v616 = vadd.f32 %v260, %v615
        %v617 = vpop.f32.mrb[0].mxu0
        %v618 = vadd.f32 %v264, %v617
        %619 = vdwg.mxu0
        %v620 = vpack.c.bf16 %v546, %v542
        %v621 = vpack.c.bf16 %v548, %v544
        %v622 = vpack.c.bf16 %v556, %v552
        %v623 = vpack.c.bf16 %v558, %v554
        %v624 = vpack.c.bf16 %v566, %v562
        %v625 = vpack.c.bf16 %v568, %v564
        %v626 = vpack.c.bf16 %v576, %v572
        %v627 = vpack.c.bf16 %v578, %v574
        %v628 = vpack.c.bf16 %v586, %v582
        %v629 = vpack.c.bf16 %v588, %v584
        %v630 = vpack.c.bf16 %v596, %v592
        %v631 = vpack.c.bf16 %v598, %v594
        %v632 = vpack.c.bf16 %v606, %v602
        %v633 = vpack.c.bf16 %v608, %v604
        %v634 = vpack.c.bf16 %v616, %v612
        %v635 = vpack.c.bf16 %v618, %v614
        %v652 = vunpack.c.l.b16 %v620
        %v653 = vunpack.c.l.b16 %v621
        %v654 = vunpack.c.h.b16 %v620
        %v655 = vunpack.c.h.b16 %v621
        %v656 = vunpack.c.l.b16 %v622
        %v657 = vunpack.c.l.b16 %v623
        %v658 = vunpack.c.h.b16 %v622
        %v659 = vunpack.c.h.b16 %v623
        %v660 = vunpack.c.l.b16 %v624
        %v661 = vunpack.c.l.b16 %v625
        %v662 = vunpack.c.h.b16 %v624
        %v663 = vunpack.c.h.b16 %v625
        %v664 = vunpack.c.l.b16 %v626
        %v665 = vunpack.c.l.b16 %v627
        %v666 = vunpack.c.h.b16 %v626
        %v667 = vunpack.c.h.b16 %v627
        %v668 = vunpack.c.l.b16 %v628
        %v669 = vunpack.c.l.b16 %v629
        %v670 = vunpack.c.h.b16 %v628
        %v671 = vunpack.c.h.b16 %v629
        %v672 = vunpack.c.l.b16 %v630
        %v673 = vunpack.c.l.b16 %v631
        %v674 = vunpack.c.h.b16 %v630
        %v675 = vunpack.c.h.b16 %v631
        %v676 = vunpack.c.l.b16 %v632
        %v677 = vunpack.c.l.b16 %v633
        %v678 = vunpack.c.h.b16 %v632
        %v679 = vunpack.c.h.b16 %v633
        %v680 = vunpack.c.l.b16 %v634
        %v681 = vunpack.c.l.b16 %v635
        %v682 = vunpack.c.h.b16 %v634
        %v683 = vunpack.c.h.b16 %v635
        %v684 = vpack.c.b16 %v653, %v652
        %v685 = vpack.c.b16 %v655, %v654
        %v686 = vpack.c.b16 %v657, %v656
        %v687 = vpack.c.b16 %v659, %v658
        %v688 = vpack.c.b16 %v661, %v660
        %v689 = vpack.c.b16 %v663, %v662
        %v690 = vpack.c.b16 %v665, %v664
        %v691 = vpack.c.b16 %v667, %v666
        %v692 = vpack.c.b16 %v669, %v668
        %v693 = vpack.c.b16 %v671, %v670
        %v694 = vpack.c.b16 %v673, %v672
        %v695 = vpack.c.b16 %v675, %v674
        %v696 = vpack.c.b16 %v677, %v676
        %v697 = vpack.c.b16 %v679, %v678
        %v698 = vpack.c.b16 %v681, %v680
        %v699 = vpack.c.b16 %v683, %v682
        %716 = vst [vmem:[%s204] sm:$0xff] %v684
        %717 = vst [vmem:[%s204 + $0x8] sm:$0xff] %v685
        %718 = vst [vmem:[%s204 + $0x10] sm:$0xff] %v686
        %719 = vst [vmem:[%s204 + $0x18] sm:$0xff] %v687
        %720 = vst [vmem:[%s204 + $0x20] sm:$0xff] %v688
        %721 = vst [vmem:[%s204 + $0x28] sm:$0xff] %v689
        %722 = vst [vmem:[%s204 + $0x30] sm:$0xff] %v690
        %723 = vst [vmem:[%s204 + $0x38] sm:$0xff] %v691
        %724 = vst [vmem:[%s204 + $0x40] sm:$0xff] %v692
        %725 = vst [vmem:[%s204 + $0x48] sm:$0xff] %v693
        %726 = vst [vmem:[%s204 + $0x50] sm:$0xff] %v694
        %727 = vst [vmem:[%s204 + $0x58] sm:$0xff] %v695
        %728 = vst [vmem:[%s204 + $0x60] sm:$0xff] %v696
        %729 = vst [vmem:[%s204 + $0x68] sm:$0xff] %v697
        %730 = vst [vmem:[%s204 + $0x70] sm:$0xff] %v698
        %731 = vst [vmem:[%s204 + $0x78] sm:$0xff] %v699
        %s732 = sand.u32 %s97, 1
        %s733 = scalar_lea.sflag [#allocation4], %s732
        %s734 = sand.u32 %s97, 1
        %s735 = smul.addr %s734, 128
        %s736 = scalar_lea.vmem [#allocation7], %s735
        // Predicated region
        $region41: #{tpu_custom_call.1} parent=31 // pred_check
          %p737 = pneg %p107
        $region42: #{tpu_custom_call.1} parent=31 // pred_check_branch
          %739 = sbr.rel (%p737) target = $region44
        $region43: #{tpu_custom_call.1} parent=31 // pred_region
          %s740 = smul.u32 16, %s21
          %s742 = ssub.s32 2048, 2048
          %743 = vsyncadd %s733, %s742
          %s744 = smul.addr %s740, 2
          %s745 = smul.addr %s744, 64
          %s746 = scalar_lea.hbm %s3, %s745
          %s747 = sshll.u32 %s736, 4
          %s748 = int_to_ptr.vmem [resolvable:$true] %s747
          %753 = dma.vmem_to_hbm [thread:$0]  %s748, 2048, %s746, %s733, 128, 128, 8
        $region44: #{tpu_custom_call.1} parent=31 // pred_fallthru
          _
      $region32: #{tpu_custom_call.1} parent=5 // pred_fallthru
        _
      %p754 = scmp.le.s32.totalorder 2, %s16
      // Predicated region
      $region45: #{tpu_custom_call.1} parent=5 // pred_check
        %p755 = pneg %p754
      $region46: #{tpu_custom_call.1} parent=5 // pred_check_branch
        %757 = sbr.rel (%p755) target = $region48
      $region47: #{tpu_custom_call.1} parent=5 // pred_region
        %s758 = ssub.s32 %s16, 2
        // Predicated region
        $region49: #{tpu_custom_call.1} parent=47 // pred_check
          %p759 = pneg %p113
        $region50: #{tpu_custom_call.1} parent=47 // pred_check_branch
          %761 = sbr.rel (%p759) target = $region52
        $region51: #{tpu_custom_call.1} parent=47 // pred_region
          %s762 = sand.u32 %s98, 1
          %s763 = scalar_lea.sflag [#allocation4], %s762
          %s764 = sand.u32 %s98, 1
          %s765 = smul.addr %s764, 128
          %s766 = scalar_lea.vmem [#allocation7], %s765
          %767 = dma.done %s763, 2048
        $region52: #{tpu_custom_call.1} parent=47 // pred_fallthru
          _
      $region48: #{tpu_custom_call.1} parent=5 // pred_fallthru
        _
    $region6: #{tpu_custom_call.1} parent=1 // loop_footer
      %s20 = sadd.s32 1, %s16
    $region7: #{tpu_custom_call.1} parent=1 // loop_footer_branch
      %15 = sbr.rel target = $region3
    $region8: #{tpu_custom_call.1} parent=1 // loop_exit
      _
    %768 = vsyncpa [#allocation3], 1
    %s769 = scalar_lea.sflag [#allocation3], 1
    %770 = vsyncpa %s769, 1
    %771 = vsyncpa [#allocation6], 1
    %772 = vsyncpa [#allocation4], 1
    %s773 = scalar_lea.sflag [#allocation4], 1
    %774 = vsyncpa %s773, 1

</llo_original>
